<compile_context>
chip_gen: v7x
topology: tpu7x:2x2x1
jax: 0.10.0
libtpu: 0.0.40
codegen_flags: <defaults>
</compile_context>

<pallas_src>
import jax
import jax.numpy as jnp
import numpy as np
from jax.experimental import pallas as pl
from jax.experimental.pallas import tpu as pltpu

EPS = 1e-5


# ---------------------------------------------------------------------------
# Kernels
# ---------------------------------------------------------------------------
def _bn_relu_conv3x3(x, w_ref, scale_ref, shift_ref):
    """Folded BN (x*scale+shift) + ReLU, then a 3x3 SAME conv as one MXU matmul.

    x:         (H, W*Cin)      lane-dense activation slab (f32)
    w_ref:     (3*W*Cin, W*Cout) block-Toeplitz conv weight
    scale_ref: (1, W*Cin)      per-channel BN scale, tiled W times along lanes
    shift_ref: (1, W*Cin)      per-channel BN shift, tiled W times along lanes
    returns    (H, W*Cout)     f32 conv output
    """
    a = jnp.maximum(x * scale_ref[...] + shift_ref[...], 0.0)          # (H, W*Cin), f32
    a = a.astype(w_ref.dtype)                                          # optional bf16 matmul input
    wc = a.shape[-1]
    zero_row = jnp.zeros((1, wc), a.dtype)
    a_prev = jnp.concatenate([zero_row, a[:-1]], axis=0)               # row h-1 (zero at top)
    a_next = jnp.concatenate([a[1:], zero_row], axis=0)                # row h+1 (zero at bottom)
    xb = jnp.concatenate([a_prev, a, a_next], axis=1)                  # (H, 3*W*Cin)
    # Single MXU pass per conv per image; f32 accumulation regardless of input dtype.
    return jnp.dot(xb, w_ref[...], preferred_element_type=jnp.float32)  # (H, W*Cout)


def _stage1_kernel(x_ref, w_ref, scale_ref, shift_ref, y_ref, stats_ref):
    """bn1 + relu1 + conv1, plus one-pass (sum, sum_sq) partials for bn2 (per grid step)."""
    nb = x_ref.shape[0]
    acc = None
    for b in range(nb):                                                # static unroll (nb small)
        y = _bn_relu_conv3x3(x_ref[b], w_ref, scale_ref, shift_ref)    # (H, W*Cout) f32
        y_ref[b] = y.astype(y_ref.dtype)
        part = jnp.concatenate(
            [jnp.sum(y, axis=0, keepdims=True),
             jnp.sum(y * y, axis=0, keepdims=True)], axis=0)           # (2, W*Cout)
        acc = part if acc is None else acc + part
    stats_ref[0] = acc


def _stage2_kernel(y1_ref, w_ref, scale_ref, shift_ref, res_ref, out_ref):
    """bn2 + relu2 + conv2 + residual add (both_preact: residual is the raw input)."""
    nb = y1_ref.shape[0]
    for b in range(nb):
        y = _bn_relu_conv3x3(y1_ref[b], w_ref, scale_ref, shift_ref)   # (H, W*Cout) f32
        out_ref[b] = (y + res_ref[b].astype(jnp.float32)).astype(out_ref.dtype)


# ---------------------------------------------------------------------------
# Wrapper helpers
# ---------------------------------------------------------------------------
def _toeplitz_conv_weight(w_oihw, width, dtype):
    """Pack an OIHW 3x3 conv weight into a block-Toeplitz (3*W*Cin, W*Cout) matrix.

    Row = kh*(W*Cin) + w_in*Cin + ci, column = w_out*Cout + co; the W-direction zero padding
    of a SAME conv is implicit.  Built with ONE einsum against constant shift matrices.
    """
    cout, cin = w_oihw.shape[0], w_oihw.shape[1]
    w_hwio = jnp.transpose(w_oihw, (2, 3, 1, 0)).astype(jnp.float32)   # (3, 3, Cin, Cout)
    shifts = np.stack([np.eye(width, k=1 - kw, dtype=np.float32)
                       for kw in range(3)])                            # (3, W, W) constant
    t = jnp.einsum("kpq,hkio->hpiqo", shifts, w_hwio)                  # (3, W, Cin, W, Cout)
    return t.reshape(3 * width * cin, width * cout).astype(dtype)


def _fold_bn(gamma, beta, mean, var, width):
    """Fold BN into per-lane (scale, shift), tiled W times along the lane axis."""
    scale_c = gamma.astype(jnp.float32) * jax.lax.rsqrt(jnp.maximum(var, 0.0) + EPS)
    shift_c = beta.astype(jnp.float32) - mean * scale_c
    return jnp.tile(scale_c, width)[None, :], jnp.tile(shift_c, width)[None, :]


def _vmem_limit_bytes(block_bytes):
    """Explicit scoped-VMEM limit: double-buffered blocks + headroom, clamped v7x-safe."""
    need = 2 * sum(block_bytes) + (1 << 20)
    return int(min(max(need, 4 << 20), 32 << 20))


# ---------------------------------------------------------------------------
# Public entry point: NCHW in / NCHW out, PyTorch OIHW conv weights
# ---------------------------------------------------------------------------
def super_compressed_gate_pre_basic_block(x_nchw, w1_oihw, w2_oihw, g1, b1, g2, b2,
                                          matmul_dtype=jnp.float32, batch_block=1):
    N, Cin, H, W = x_nchw.shape
    Cout = w1_oihw.shape[0]
    assert Cin == Cout, "downsample=None path requires in_plane == out_plane"
    assert N % batch_block == 0, "batch must be divisible by batch_block"
    NB = batch_block
    NBLK = N // NB

    WCin, WCout = W * Cin, W * Cout
    f32 = jnp.float32
    isz = jnp.dtype(f32).itemsize
    wsz = jnp.dtype(matmul_dtype).itemsize

    # Lane-dense activation slab: (N, H, W*C).
    x_nhwc = jnp.transpose(x_nchw, (0, 2, 3, 1)).astype(f32)           # (N, H, W, C)
    x2 = x_nhwc.reshape(N, H, WCin)

    # bn1 batch statistics: fused one-pass E[x], E[x^2] (per-channel, biased variance).
    mean1 = jnp.mean(x_nhwc, axis=(0, 1, 2))
    ex2_1 = jnp.mean(x_nhwc * x_nhwc, axis=(0, 1, 2))
    var1 = jnp.maximum(ex2_1 - mean1 * mean1, 0.0)
    scale1, shift1 = _fold_bn(g1, b1, mean1, var1, W)

    # Pre-packed block-Toeplitz conv weights (one matmul per conv per image).
    w1_big = _toeplitz_conv_weight(w1_oihw, W, matmul_dtype)           # (3*W*Cin, W*Cout)
    w2_big = _toeplitz_conv_weight(w2_oihw, W, matmul_dtype)           # (3*W*Cout, W*Cout)

    # ---------------- stage 1: bn1 + relu1 + conv1 (+ bn2 stat partials) ----------------
    blk1 = [NB * H * WCin * isz, 3 * WCin * WCout * wsz, 2 * WCin * isz,
            NB * H * WCout * isz, 2 * WCout * isz]
    y1, stats = pl.pallas_call(
        _stage1_kernel,
        out_shape=(jax.ShapeDtypeStruct((N, H, WCout), f32),
                   jax.ShapeDtypeStruct((NBLK, 2, WCout), f32)),
        grid=(NBLK,),
        in_specs=[pl.BlockSpec((NB, H, WCin), lambda n: (n, 0, 0)),
                  pl.BlockSpec((3 * WCin, WCout), lambda n: (0, 0)),
                  pl.BlockSpec((1, WCin), lambda n: (0, 0)),
                  pl.BlockSpec((1, WCin), lambda n: (0, 0))],
        out_specs=[pl.BlockSpec((NB, H, WCout), lambda n: (n, 0, 0)),
                   pl.BlockSpec((1, 2, WCout), lambda n: (n, 0, 0))],
        compiler_params=pltpu.CompilerParams(
            dimension_semantics=("parallel",),
            vmem_limit_bytes=_vmem_limit_bytes(blk1)),
    )(x2, w1_big, scale1, shift1)

    # Finish bn2 statistics from per-tile one-pass partials (E[x], E[x^2]).
    ssum = stats.reshape(-1, 2, W, Cout).sum(axis=(0, 2))              # (2, Cout)
    count = float(N * H * W)
    mean2 = ssum[0] / count
    var2 = jnp.maximum(ssum[1] / count - mean2 * mean2, 0.0)
    scale2, shift2 = _fold_bn(g2, b2, mean2, var2, W)

    # ---------------- stage 2: bn2 + relu2 + conv2 + residual ----------------
    blk2 = [NB * H * WCout * isz, 3 * WCout * WCout * wsz, 2 * WCout * isz,
            NB * H * WCin * isz, NB * H * WCout * isz]
    out2 = pl.pallas_call(
        _stage2_kernel,
        out_shape=jax.ShapeDtypeStruct((N, H, WCout), f32),
        grid=(NBLK,),
        in_specs=[pl.BlockSpec((NB, H, WCout), lambda n: (n, 0, 0)),
                  pl.BlockSpec((3 * WCout, WCout), lambda n: (0, 0)),
                  pl.BlockSpec((1, WCout), lambda n: (0, 0)),
                  pl.BlockSpec((1, WCout), lambda n: (0, 0)),
                  pl.BlockSpec((NB, H, WCin), lambda n: (n, 0, 0))],
        out_specs=pl.BlockSpec((NB, H, WCout), lambda n: (n, 0, 0)),
        compiler_params=pltpu.CompilerParams(
            dimension_semantics=("parallel",),
            vmem_limit_bytes=_vmem_limit_bytes(blk2)),
    )(y1, w2_big, scale2, shift2, x2)

    return jnp.transpose(out2.reshape(N, H, W, Cout), (0, 3, 1, 2))    # back to NCHW


# ---------------------------------------------------------------------------
# Pure-JAX reference (same math, via conv_general_dilated) for a correctness check
# ---------------------------------------------------------------------------
def _reference(x_nchw, w1, w2, g1, b1, g2, b2):
    x = jnp.transpose(x_nchw, (0, 2, 3, 1)).astype(jnp.float32)        # NHWC
    residual = x

    def bn_relu(t, g, b):
        m = jnp.mean(t, axis=(0, 1, 2), keepdims=True)
        v = jnp.mean((t - m) ** 2, axis=(0, 1, 2), keepdims=True)
        return jnp.maximum((t - m) * jax.lax.rsqrt(v + EPS) * g + b, 0.0)

    def conv3x3(t, w_oihw):
        w_hwio = jnp.transpose(w_oihw, (2, 3, 1, 0)).astype(jnp.float32)
        return jax.lax.conv_general_dilated(
            t, w_hwio, window_strides=(1, 1), padding="SAME",
            dimension_numbers=("NHWC", "HWIO", "NHWC"))

    t = bn_relu(x, g1, b1)
    t = conv3x3(t, w1)
    t = bn_relu(t, g2, b2)
    t = conv3x3(t, w2)
    out = t + residual
    return jnp.transpose(out, (0, 3, 1, 2))


if __name__ == "__main__":
    # Small shapes consistent with the module: in_plane = out_plane = 8, group_size = 4.
    N, C, H, W = 2, 8, 16, 16

    key = jax.random.PRNGKey(0)
    kx, kw1, kw2, kg1, kb1, kg2, kb2 = jax.random.split(key, 7)

    x = jax.random.normal(kx, (N, C, H, W), jnp.float32)
    w1 = jax.random.normal(kw1, (C, C, 3, 3), jnp.float32) * 0.1       # conv1 weight (OIHW)
    w2 = jax.random.normal(kw2, (C, C, 3, 3), jnp.float32) * 0.1       # conv2 weight (OIHW)
    gamma1 = 1.0 + 0.1 * jax.random.normal(kg1, (C,), jnp.float32)
    beta1 = 0.1 * jax.random.normal(kb1, (C,), jnp.float32)
    gamma2 = 1.0 + 0.1 * jax.random.normal(kg2, (C,), jnp.float32)
    beta2 = 0.1 * jax.random.normal(kb2, (C,), jnp.float32)

    out = super_compressed_gate_pre_basic_block(x, w1, w2, gamma1, beta1, gamma2, beta2)
    out = jax.block_until_ready(out)

    ref = jax.block_until_ready(_reference(x, w1, w2, gamma1, beta1, gamma2, beta2))
    assert out.shape == (N, C, H, W)
    assert jnp.allclose(out, ref, rtol=1e-3, atol=1e-3), \
        f"max abs err {jnp.max(jnp.abs(out - ref))}"

    print("KERNEL_OK")
</pallas_src>

<mosaic_0001>
module attributes {stable_mosaic.version = 11 : i64} {
  func.func @_stage1_kernel(%arg0: i32, %arg1: memref<1x16x128xf32, #tpu.memory_space<vmem>>, %arg2: memref<384x128xf32, #tpu.memory_space<vmem>>, %arg3: memref<1x128xf32, #tpu.memory_space<vmem>>, %arg4: memref<1x128xf32, #tpu.memory_space<vmem>>, %arg5: memref<1x16x128xf32, #tpu.memory_space<vmem>>, %arg6: memref<1x2x128xf32, #tpu.memory_space<vmem>>) attributes {dimension_semantics = [#tpu.dimension_semantics<parallel>], iteration_bounds = array<i64: 2>, scalar_prefetch = 0 : i64, scratch_operands = 0 : i64, tpu.core_type = #tpu.core_type<tc>, window_params = [{transform_indices = @transform_0, window_bounds = array<i64: 1, 16, 128>}, {pipeline_mode = #tpu.pipeline_mode<synchronous>, transform_indices = @transform_1, window_bounds = array<i64: 384, 128>}, {pipeline_mode = #tpu.pipeline_mode<synchronous>, transform_indices = @transform_2, window_bounds = array<i64: 1, 128>}, {pipeline_mode = #tpu.pipeline_mode<synchronous>, transform_indices = @transform_3, window_bounds = array<i64: 1, 128>}, {transform_indices = @transform_4, window_bounds = array<i64: 1, 16, 128>}, {transform_indices = @transform_5, window_bounds = array<i64: 1, 2, 128>}]} {
    %c0 = arith.constant 0 : index
    %c0_0 = arith.constant 0 : index
    %c0_1 = arith.constant 0 : index
    %0 = vector.load %arg1[%c0, %c0_0, %c0_1] : memref<1x16x128xf32, #tpu.memory_space<vmem>>, vector<1x16x128xf32>
    %1 = vector.shape_cast %0 : vector<1x16x128xf32> to vector<16x128xf32>
    %c0_2 = arith.constant 0 : index
    %c0_3 = arith.constant 0 : index
    %2 = vector.load %arg3[%c0_2, %c0_3] : memref<1x128xf32, #tpu.memory_space<vmem>>, vector<1x128xf32>
    %3 = vector.broadcast %2 : vector<1x128xf32> to vector<16x128xf32>
    %4 = arith.mulf %1, %3 : vector<16x128xf32>
    %c0_4 = arith.constant 0 : index
    %c0_5 = arith.constant 0 : index
    %5 = vector.load %arg4[%c0_4, %c0_5] : memref<1x128xf32, #tpu.memory_space<vmem>>, vector<1x128xf32>
    %6 = vector.broadcast %5 : vector<1x128xf32> to vector<16x128xf32>
    %7 = arith.addf %4, %6 : vector<16x128xf32>
    %cst = arith.constant 0.000000e+00 : f32
    %8 = vector.broadcast %cst : f32 to vector<16x128xf32>
    %9 = arith.maximumf %7, %8 : vector<16x128xf32>
    %cst_6 = arith.constant 0.000000e+00 : f32
    %10 = vector.broadcast %cst_6 : f32 to vector<1x128xf32>
    %11 = vector.extract_strided_slice %9 {offsets = [0, 0], sizes = [15, 128], strides = [1, 1]} : vector<16x128xf32> to vector<15x128xf32>
    %12 = tpu.concatenate %10, %11 in 0 : vector<1x128xf32>, vector<15x128xf32> -> vector<16x128xf32>
    %13 = vector.extract_strided_slice %9 {offsets = [1, 0], sizes = [15, 128], strides = [1, 1]} : vector<16x128xf32> to vector<15x128xf32>
    %14 = tpu.concatenate %13, %10 in 0 : vector<15x128xf32>, vector<1x128xf32> -> vector<16x128xf32>
    %15 = tpu.concatenate %12, %9, %14 in 1 : vector<16x128xf32>, vector<16x128xf32>, vector<16x128xf32> -> vector<16x384xf32>
    %c0_7 = arith.constant 0 : index
    %c0_8 = arith.constant 0 : index
    %16 = vector.load %arg2[%c0_7, %c0_8] : memref<384x128xf32, #tpu.memory_space<vmem>>, vector<384x128xf32>
    %cst_9 = arith.constant dense<0.000000e+00> : vector<16x128xf32>
    %17 = tpu.matmul %15, %16, %cst_9 {dimension_numbers = #tpu.dot_dimension_numbers<[1], [0], [0], [1], [0, 0, 1, 1], [], []>} : vector<16x384xf32>, vector<384x128xf32>, vector<16x128xf32> -> vector<16x128xf32>
    %c0_10 = arith.constant 0 : index
    %c0_11 = arith.constant 0 : index
    %c0_12 = arith.constant 0 : index
    %18 = vector.load %arg5[%c0_10, %c0_11, %c0_12] : memref<1x16x128xf32, #tpu.memory_space<vmem>>, vector<1x16x128xf32>
    %19 = vector.shape_cast %18 : vector<1x16x128xf32> to vector<16x128xf32>
    %20 = vector.shape_cast %17 : vector<16x128xf32> to vector<1x16x128xf32>
    tpu.vector_store %arg5[%c0_10, %c0_11, %c0_12], %20 {strides = array<i32>} : memref<1x16x128xf32, #tpu.memory_space<vmem>>, vector<1x16x128xf32>,
    %cst_13 = arith.constant dense<0.000000e+00> : vector<128xf32>
    %21 = vector.multi_reduction <add>, %17, %cst_13 [0] : vector<16x128xf32> to vector<128xf32>
    %22 = vector.shape_cast %21 : vector<128xf32> to vector<1x128xf32>
    %23 = arith.mulf %17, %17 : vector<16x128xf32>
    %cst_14 = arith.constant dense<0.000000e+00> : vector<128xf32>
    %24 = vector.multi_reduction <add>, %23, %cst_14 [0] : vector<16x128xf32> to vector<128xf32>
    %25 = vector.shape_cast %24 : vector<128xf32> to vector<1x128xf32>
    %26 = tpu.concatenate %22, %25 in 0 : vector<1x128xf32>, vector<1x128xf32> -> vector<2x128xf32>
    %c0_15 = arith.constant 0 : index
    %c0_16 = arith.constant 0 : index
    %c0_17 = arith.constant 0 : index
    %27 = vector.load %arg6[%c0_15, %c0_16, %c0_17] : memref<1x2x128xf32, #tpu.memory_space<vmem>>, vector<1x2x128xf32>
    %28 = vector.shape_cast %27 : vector<1x2x128xf32> to vector<2x128xf32>
    %29 = vector.shape_cast %26 : vector<2x128xf32> to vector<1x2x128xf32>
    tpu.vector_store %arg6[%c0_15, %c0_16, %c0_17], %29 {strides = array<i32>} : memref<1x2x128xf32, #tpu.memory_space<vmem>>, vector<1x2x128xf32>,
    return
  }
  func.func @transform_0(%arg0: i32) -> (i32, i32, i32) {
    %c0_i32 = arith.constant 0 : i32
    %c0_i32_0 = arith.constant 0 : i32
    %c0_i32_1 = arith.constant 0 : i32
    return %arg0, %c0_i32, %c0_i32_0 : i32, i32, i32
  }
  func.func @transform_1(%arg0: i32) -> (i32, i32) {
    %c0_i32 = arith.constant 0 : i32
    %c0_i32_0 = arith.constant 0 : i32
    %c0_i32_1 = arith.constant 0 : i32
    return %c0_i32, %c0_i32_0 : i32, i32
  }
  func.func @transform_2(%arg0: i32) -> (i32, i32) {
    %c0_i32 = arith.constant 0 : i32
    %c0_i32_0 = arith.constant 0 : i32
    %c0_i32_1 = arith.constant 0 : i32
    return %c0_i32, %c0_i32_0 : i32, i32
  }
  func.func @transform_3(%arg0: i32) -> (i32, i32) {
    %c0_i32 = arith.constant 0 : i32
    %c0_i32_0 = arith.constant 0 : i32
    %c0_i32_1 = arith.constant 0 : i32
    return %c0_i32, %c0_i32_0 : i32, i32
  }
  func.func @transform_4(%arg0: i32) -> (i32, i32, i32) {
    %c0_i32 = arith.constant 0 : i32
    %c0_i32_0 = arith.constant 0 : i32
    %c0_i32_1 = arith.constant 0 : i32
    return %arg0, %c0_i32, %c0_i32_0 : i32, i32, i32
  }
  func.func @transform_5(%arg0: i32) -> (i32, i32, i32) {
    %c0_i32 = arith.constant 0 : i32
    %c0_i32_0 = arith.constant 0 : i32
    %c0_i32_1 = arith.constant 0 : i32
    return %arg0, %c0_i32, %c0_i32_0 : i32, i32, i32
  }
}

</mosaic_0001>

<llo_original>
// kernel: tpu_custom_call.1
$region0: #{tpu_custom_call.1}
  #allocation0 [shape = 'u32[]', space=smem, size = 0x4, offset = 0x4, fixed_abs, tag = 'smem constant byte address 0x4 - core index']
  #allocation1 [shape = 'u32[144,128]{1,0:T(1,128)}', space=vmem, size = 0x12000, scoped, tag = 'internal scratch']
  %s0 = inlined_call_operand.hbm [shape: f32[2,16,128], index: 0, kind: input, shape index: {}]
  %s1 = inlined_call_operand.hbm [shape: f32[384,128], index: 1, kind: input, shape index: {}]
  %s2 = inlined_call_operand.vmem [shape: f32[1,128], index: 2, kind: input, shape index: {}]
  %s3 = inlined_call_operand.vmem [shape: f32[1,128], index: 3, kind: input, shape index: {}]
  %s4 = inlined_call_operand.hbm [shape: f32[2,16,128], index: 4, kind: output, shape index: {0}]
  %s5 = inlined_call_operand.hbm [shape: f32[2,2,128], index: 5, kind: output, shape index: {1}]
  %6 = xla_tuple %s4, %s5
  %s7 = sld [smem:[#allocation0]]
  $region65: #{tpu_custom_call.1} parent=0
    _
  %s9 = ssub.s32 1, %s7
  %s10 = scalar_select 0, %s9, %s7
  $region1: #{tpu_custom_call.1} parent=0
    #allocation2 [shape = 'u8[16384]{0}', space=vmem, size = 0x4000, scoped, tag = 'input window, operand 0']
    #allocation3 [shape = 's32[2]{0}', space=sflag, size = 0x8, scoped, tag = 'scoped memory for tpu_custom_call.1']
    #allocation4 [shape = 's32[2]{0}', space=sflag, size = 0x8, scoped, tag = 'scoped memory for tpu_custom_call.1']
    #allocation5 [shape = 'u8[196608]{0}', space=vmem, size = 0x30000, scoped, tag = 'input window, operand 1, single buffered']
    #allocation6 [shape = 's32[1]{0}', space=sflag, size = 0x4, scoped, tag = 'scoped memory for tpu_custom_call.1']
    #allocation7 [shape = 'u8[16384]{0}', space=vmem, size = 0x4000, scoped, tag = 'output window, operand 0']
    #allocation8 [shape = 'u8[2048]{0}', space=vmem, size = 0x800, scoped, tag = 'output window, operand 1']
    #allocation9 [shape = 's32[2]{0}', space=sflag, size = 0x8, scoped, tag = 'scoped memory for tpu_custom_call.1']
    %11 = vsyncpa [#allocation3], 0
    %s12 = scalar_lea.sflag [#allocation3], 1
    %13 = vsyncpa %s12, 0
    %14 = vsyncpa [#allocation6], 0
    %15 = vsyncpa [#allocation4], 0
    %s16 = scalar_lea.sflag [#allocation4], 1
    %17 = vsyncpa %s16, 0
    %18 = vsyncpa [#allocation9], 0
    %s19 = scalar_lea.sflag [#allocation9], 1
    %20 = vsyncpa %s19, 0
    loop: start=0, step=1, limit=4
    $region2: #{tpu_custom_call.1} parent=1 // loop_pre_header
      _
    $region3: #{tpu_custom_call.1} parent=1 // loop_header
      %s22 = sphi 0, %s26
      %p23 = scmp.ge.s32.totalorder %s22, 4
      %s32 = sphi 0, %s34
      %s35 = sphi 0, %s32
      %s36 = sphi 0, %s35
      %s52 = sphi 0, %s36
      %s56 = sphi 0, %s56
      %s58 = sphi 0, %s56
      %s59 = sphi 0, %s58
      %s73 = sphi 0, %s59
      %s77 = sphi 0, %s77
      %s79 = sphi 0, %s77
      %s80 = sphi 0, %s79
      %s94 = sphi 0, %s80
      %s98 = sphi 0, %s98
      %s100 = sphi 0, %s98
      %s101 = sphi 0, %s100
      %s115 = sphi 0, %s101
      %s121 = sphi 0, %s123
      %s124 = sphi 0, %s121
      %s125 = sphi 0, %s124
      %s141 = sphi 0, %s125
      %s147 = sphi 0, %s149
      %s150 = sphi 0, %s147
      %s151 = sphi 0, %s150
      %s167 = sphi 0, %s151
    $region4: #{tpu_custom_call.1} parent=1 // loop_header_branch
      %25 = sbr.rel (%p23) target = $region8
    $region5: #{tpu_custom_call.1} parent=1 // loop_body
      %s27 = ssub.s32 %s22, 1
      %s28 = ssub.s32 %s22, 2
      %s29 = sadd.s32 %s22, 1
      %s30 = ssub.s32 %s22, %s29
      %p31 = scmp.eq.s32.totalorder %s30, 0
      %s33 = sadd.s32 %s32, 1
      %s34 = scalar_select %p31, %s32, %s33
      %p37 = pneg %p31
      %p38 = scmp.eq.s32.totalorder %s22, 1
      %p39 = por %p37, %p38
      %p40 = scmp.ne.s32.totalorder %s32, %s35
      %p41 = scmp.eq.s32.totalorder %s22, 0
      %p42 = por %p40, %p41
      %p43 = scmp.ne.s32.totalorder %s32, %s35
      %p44 = scmp.eq.s32.totalorder %s27, 1
      %p45 = por %p43, %p44
      %p46 = scmp.ne.s32.totalorder %s35, %s36
      %p47 = scmp.eq.s32.totalorder %s27, 0
      %p48 = por %p46, %p47
      %p49 = scmp.ne.s32.totalorder %s35, %s36
      %p50 = scmp.eq.s32.totalorder %s28, 1
      %p51 = por %p49, %p50
      %p53 = scmp.ne.s32.totalorder %s36, %s52
      %p54 = scmp.eq.s32.totalorder %s28, 0
      %p55 = por %p53, %p54
      %s57 = sadd.s32 %s56, 1
      %p60 = scmp.eq.s32.totalorder %s22, 1
      %p61 = scmp.ne.s32.totalorder %s56, %s58
      %p62 = scmp.eq.s32.totalorder %s22, 0
      %p63 = por %p61, %p62
      %p64 = scmp.ne.s32.totalorder %s56, %s58
      %p65 = scmp.eq.s32.totalorder %s27, 1
      %p66 = por %p64, %p65
      %p67 = scmp.ne.s32.totalorder %s58, %s59
      %p68 = scmp.eq.s32.totalorder %s27, 0
      %p69 = por %p67, %p68
      %p70 = scmp.ne.s32.totalorder %s58, %s59
      %p71 = scmp.eq.s32.totalorder %s28, 1
      %p72 = por %p70, %p71
      %p74 = scmp.ne.s32.totalorder %s59, %s73
      %p75 = scmp.eq.s32.totalorder %s28, 0
      %p76 = por %p74, %p75
      %s78 = sadd.s32 %s77, 1
      %p81 = scmp.eq.s32.totalorder %s22, 1
      %p82 = scmp.ne.s32.totalorder %s77, %s79
      %p83 = scmp.eq.s32.totalorder %s22, 0
      %p84 = por %p82, %p83
      %p85 = scmp.ne.s32.totalorder %s77, %s79
      %p86 = scmp.eq.s32.totalorder %s27, 1
      %p87 = por %p85, %p86
      %p88 = scmp.ne.s32.totalorder %s79, %s80
      %p89 = scmp.eq.s32.totalorder %s27, 0
      %p90 = por %p88, %p89
      %p91 = scmp.ne.s32.totalorder %s79, %s80
      %p92 = scmp.eq.s32.totalorder %s28, 1
      %p93 = por %p91, %p92
      %p95 = scmp.ne.s32.totalorder %s80, %s94
      %p96 = scmp.eq.s32.totalorder %s28, 0
      %p97 = por %p95, %p96
      %s99 = sadd.s32 %s98, 1
      %p102 = scmp.eq.s32.totalorder %s22, 1
      %p103 = scmp.ne.s32.totalorder %s98, %s100
      %p104 = scmp.eq.s32.totalorder %s22, 0
      %p105 = por %p103, %p104
      %p106 = scmp.ne.s32.totalorder %s98, %s100
      %p107 = scmp.eq.s32.totalorder %s27, 1
      %p108 = por %p106, %p107
      %p109 = scmp.ne.s32.totalorder %s100, %s101
      %p110 = scmp.eq.s32.totalorder %s27, 0
      %p111 = por %p109, %p110
      %p112 = scmp.ne.s32.totalorder %s100, %s101
      %p113 = scmp.eq.s32.totalorder %s28, 1
      %p114 = por %p112, %p113
      %p116 = scmp.ne.s32.totalorder %s101, %s115
      %p117 = scmp.eq.s32.totalorder %s28, 0
      %p118 = por %p116, %p117
      %s119 = ssub.s32 %s22, %s29
      %p120 = scmp.eq.s32.totalorder %s119, 0
      %s122 = sadd.s32 %s121, 1
      %s123 = scalar_select %p120, %s121, %s122
      %p126 = pneg %p120
      %p127 = scmp.eq.s32.totalorder %s22, 1
      %p128 = por %p126, %p127
      %p129 = scmp.ne.s32.totalorder %s121, %s124
      %p130 = scmp.eq.s32.totalorder %s22, 0
      %p131 = por %p129, %p130
      %p132 = scmp.ne.s32.totalorder %s121, %s124
      %p133 = scmp.eq.s32.totalorder %s27, 1
      %p134 = por %p132, %p133
      %p135 = scmp.ne.s32.totalorder %s124, %s125
      %p136 = scmp.eq.s32.totalorder %s27, 0
      %p137 = por %p135, %p136
      %p138 = scmp.ne.s32.totalorder %s124, %s125
      %p139 = scmp.eq.s32.totalorder %s28, 1
      %p140 = por %p138, %p139
      %p142 = scmp.ne.s32.totalorder %s125, %s141
      %p143 = scmp.eq.s32.totalorder %s28, 0
      %p144 = por %p142, %p143
      %s145 = ssub.s32 %s22, %s29
      %p146 = scmp.eq.s32.totalorder %s145, 0
      %s148 = sadd.s32 %s147, 1
      %s149 = scalar_select %p146, %s147, %s148
      %p152 = pneg %p146
      %p153 = scmp.eq.s32.totalorder %s22, 1
      %p154 = por %p152, %p153
      %p155 = scmp.ne.s32.totalorder %s147, %s150
      %p156 = scmp.eq.s32.totalorder %s22, 0
      %p157 = por %p155, %p156
      %p158 = scmp.ne.s32.totalorder %s147, %s150
      %p159 = scmp.eq.s32.totalorder %s27, 1
      %p160 = por %p158, %p159
      %p161 = scmp.ne.s32.totalorder %s150, %s151
      %p162 = scmp.eq.s32.totalorder %s27, 0
      %p163 = por %p161, %p162
      %p164 = scmp.ne.s32.totalorder %s150, %s151
      %p165 = scmp.eq.s32.totalorder %s28, 1
      %p166 = por %p164, %p165
      %p168 = scmp.ne.s32.totalorder %s151, %s167
      %p169 = scmp.eq.s32.totalorder %s28, 0
      %p170 = por %p168, %p169
      %p171 = scmp.le.s32.totalorder 1, %s22
      %p172 = scmp.lt.s32.totalorder %s22, 3
      %p173 = pnand %p171, %p172
      %p174 = pneg %p173
      // Predicated region
      $region9: #{tpu_custom_call.1} parent=5 // pred_check
        _
      $region10: #{tpu_custom_call.1} parent=5 // pred_check_branch
        %176 = sbr.rel (%p173) target = $region12
      $region11: #{tpu_custom_call.1} parent=5 // pred_region
        %s177 = ssub.s32 %s22, 1
        // Predicated region
        $region13: #{tpu_custom_call.1} parent=11 // pred_check
          %p178 = pneg %p69
        $region14: #{tpu_custom_call.1} parent=11 // pred_check_branch
          %180 = sbr.rel (%p178) target = $region16
        $region15: #{tpu_custom_call.1} parent=11 // pred_region
          %s182 = ssub.s32 6144, 6144
          %183 = vsyncadd [#allocation6], %s182
          %s184 = sshll.u32 [#allocation5], 4
          %s185 = int_to_ptr.vmem [resolvable:$true] %s184
          %190 = dma.hbm_to_vmem [thread:$0]  %s1, 6144, %s185, [#allocation6], 128, 128, 8
        $region16: #{tpu_custom_call.1} parent=11 // pred_fallthru
          _
        // Predicated region
        $region17: #{tpu_custom_call.1} parent=11 // pred_check
          %p191 = pneg %p90
        $region18: #{tpu_custom_call.1} parent=11 // pred_check_branch
          %193 = sbr.rel (%p191) target = $region20
        $region19: #{tpu_custom_call.1} parent=11 // pred_region
          _
        $region20: #{tpu_custom_call.1} parent=11 // pred_fallthru
          _
        // Predicated region
        $region21: #{tpu_custom_call.1} parent=11 // pred_check
          %p194 = pneg %p111
        $region22: #{tpu_custom_call.1} parent=11 // pred_check_branch
          %196 = sbr.rel (%p194) target = $region24
        $region23: #{tpu_custom_call.1} parent=11 // pred_region
          _
        $region24: #{tpu_custom_call.1} parent=11 // pred_fallthru
          _
      $region12: #{tpu_custom_call.1} parent=5 // pred_fallthru
        _
      %p197 = scmp.lt.s32.totalorder %s22, 2
      // Predicated region
      $region25: #{tpu_custom_call.1} parent=5 // pred_check
        %p198 = pneg %p197
      $region26: #{tpu_custom_call.1} parent=5 // pred_check_branch
        %200 = sbr.rel (%p198) target = $region28
      $region27: #{tpu_custom_call.1} parent=5 // pred_region
        // Predicated region
        $region29: #{tpu_custom_call.1} parent=27 // pred_check
          %p201 = pneg %p42
        $region30: #{tpu_custom_call.1} parent=27 // pred_check_branch
          %203 = sbr.rel (%p201) target = $region32
        $region31: #{tpu_custom_call.1} parent=27 // pred_region
          %s204 = sand.u32 %s32, 1
          %s205 = scalar_lea.sflag [#allocation3], %s204
          %s206 = sand.u32 %s32, 1
          %s207 = smul.addr %s206, 16
          %s208 = scalar_lea.vmem [#allocation2], %s207
          %s210 = ssub.s32 256, 256
          %211 = vsyncadd %s205, %s210
          %s212 = smul.addr %s22, 2
          %s213 = smul.addr %s212, 128
          %s214 = scalar_lea.hbm %s0, %s213
          %s215 = sshll.u32 %s208, 4
          %s216 = int_to_ptr.vmem [resolvable:$true] %s215
          %221 = dma.hbm_to_vmem [thread:$0]  %s214, 256, %s216, %s205, 128, 128, 8
        $region32: #{tpu_custom_call.1} parent=27 // pred_fallthru
          _
      $region28: #{tpu_custom_call.1} parent=5 // pred_fallthru
        _
      %p222 = scmp.le.s32.totalorder 1, %s22
      %p223 = scmp.lt.s32.totalorder %s22, 3
      %p224 = pnand %p222, %p223
      %p225 = pneg %p224
      // Predicated region
      $region33: #{tpu_custom_call.1} parent=5 // pred_check
        _
      $region34: #{tpu_custom_call.1} parent=5 // pred_check_branch
        %227 = sbr.rel (%p224) target = $region36
      $region35: #{tpu_custom_call.1} parent=5 // pred_region
        %s228 = ssub.s32 %s22, 1
        %s229 = sand.u32 %s35, 1
        %s230 = scalar_lea.sflag [#allocation3], %s229
        %s231 = sand.u32 %s35, 1
        %s232 = smul.addr %s231, 16
        %s233 = scalar_lea.vmem [#allocation2], %s232
        // Predicated region
        $region37: #{tpu_custom_call.1} parent=35 // pred_check
          %p234 = pneg %p48
        $region38: #{tpu_custom_call.1} parent=35 // pred_check_branch
          %236 = sbr.rel (%p234) target = $region40
        $region39: #{tpu_custom_call.1} parent=35 // pred_region
          %237 = dma.done %s230, 256
        $region40: #{tpu_custom_call.1} parent=35 // pred_fallthru
          _
        // Predicated region
        $region41: #{tpu_custom_call.1} parent=35 // pred_check
          %p238 = pneg %p69
        $region42: #{tpu_custom_call.1} parent=35 // pred_check_branch
          %240 = sbr.rel (%p238) target = $region44
        $region43: #{tpu_custom_call.1} parent=35 // pred_region
          %241 = dma.done [#allocation6], 6144
        $region44: #{tpu_custom_call.1} parent=35 // pred_fallthru
          _
        %s242 = sand.u32 %s35, 1
        %s243 = scalar_lea.sflag [#allocation3], %s242
        %s244 = sand.u32 %s35, 1
        %s245 = smul.addr %s244, 16
        %s246 = scalar_lea.vmem [#allocation2], %s245
        %p247 = pneg %p48
        %p248 = pneg %p45
        %p249 = pneg %p69
        %p250 = pneg %p66
        %p251 = pneg %p90
        %p252 = pneg %p87
        %p253 = pneg %p111
        %p254 = pneg %p108
        %p255 = pneg %p137
        %p256 = pneg %p134
        %s257 = sand.u32 %s124, 1
        %s258 = scalar_lea.sflag [#allocation4], %s257
        %s259 = sand.u32 %s124, 1
        %s260 = smul.addr %s259, 16
        %s261 = scalar_lea.vmem [#allocation7], %s260
        %p262 = pneg %p163
        %p263 = pneg %p160
        %s264 = sand.u32 %s150, 1
        %s265 = scalar_lea.sflag [#allocation9], %s264
        %s266 = sand.u32 %s150, 1
        %s267 = smul.addr %s266, 2
        %s268 = scalar_lea.vmem [#allocation8], %s267
        %v269 = vld [vmem:[%s233] sm:$0xff]
        %v270 = vld [vmem:[%s233 + $0x8] sm:$0xff]
        %v271 = vld [vmem:[%s2] sm:$0x1]
        %v273 = vlaneseq
        %v274 = vshrl.u32 %v273, 7
        %v275 = vsub.s32 0, %v274
        %v276 = vrot.slane %v271, %v275
        %v278 = vmul.f32 %v269, %v276
        %v279 = vmul.f32 %v270, %v276
        %v280 = vld [vmem:[%s3] sm:$0x1]
        %v282 = vlaneseq
        %v283 = vshrl.u32 %v282, 7
        %v284 = vsub.s32 0, %v283
        %v285 = vrot.slane %v280, %v284
        %v287 = vadd.f32 %v278, %v285
        %v288 = vadd.f32 %v279, %v285
        %v289 = vmax.f32 %v287, 0.0
        %v290 = vmax.f32 %v288, 0.0
        %vm293 = vcmask 1040384
        %v294 = vrot.slane %v289, 7
        %v295 = vrot.slane %v290, 7
        %v296 = vsel %vm293, %v294, %v295
        %v299 = vsel %vm293, 0.0, %v294
        %vm300 = vcmask 1046528
        %v301 = vrot.slane %v289, 1
        %v302 = vrot.slane %v290, 1
        %v303 = vsel %vm300, %v301, %v302
        %v306 = vsel %vm300, %v302, 0.0
        %v307 = vld [vmem:[#allocation5] sm:$0xff]
        %v308 = vld [vmem:[#allocation5 + $0x8] sm:$0xff]
        %v309 = vld [vmem:[#allocation5 + $0x10] sm:$0xff]
        %v310 = vld [vmem:[#allocation5 + $0x18] sm:$0xff]
        %v311 = vld [vmem:[#allocation5 + $0x20] sm:$0xff]
        %v312 = vld [vmem:[#allocation5 + $0x28] sm:$0xff]
        %v313 = vld [vmem:[#allocation5 + $0x30] sm:$0xff]
        %v314 = vld [vmem:[#allocation5 + $0x38] sm:$0xff]
        %v315 = vld [vmem:[#allocation5 + $0x40] sm:$0xff]
        %v316 = vld [vmem:[#allocation5 + $0x48] sm:$0xff]
        %v317 = vld [vmem:[#allocation5 + $0x50] sm:$0xff]
        %v318 = vld [vmem:[#allocation5 + $0x58] sm:$0xff]
        %v319 = vld [vmem:[#allocation5 + $0x60] sm:$0xff]
        %v320 = vld [vmem:[#allocation5 + $0x68] sm:$0xff]
        %v321 = vld [vmem:[#allocation5 + $0x70] sm:$0xff]
        %v322 = vld [vmem:[#allocation5 + $0x78] sm:$0xff]
        %v323 = vld [vmem:[#allocation5 + $0x80] sm:$0xff]
        %v324 = vld [vmem:[#allocation5 + $0x88] sm:$0xff]
        %v325 = vld [vmem:[#allocation5 + $0x90] sm:$0xff]
        %v326 = vld [vmem:[#allocation5 + $0x98] sm:$0xff]
        %v327 = vld [vmem:[#allocation5 + $0xa0] sm:$0xff]
        %v328 = vld [vmem:[#allocation5 + $0xa8] sm:$0xff]
        %v329 = vld [vmem:[#allocation5 + $0xb0] sm:$0xff]
        %v330 = vld [vmem:[#allocation5 + $0xb8] sm:$0xff]
        %v331 = vld [vmem:[#allocation5 + $0xc0] sm:$0xff]
        %v332 = vld [vmem:[#allocation5 + $0xc8] sm:$0xff]
        %v333 = vld [vmem:[#allocation5 + $0xd0] sm:$0xff]
        %v334 = vld [vmem:[#allocation5 + $0xd8] sm:$0xff]
        %v335 = vld [vmem:[#allocation5 + $0xe0] sm:$0xff]
        %v336 = vld [vmem:[#allocation5 + $0xe8] sm:$0xff]
        %v337 = vld [vmem:[#allocation5 + $0xf0] sm:$0xff]
        %v338 = vld [vmem:[#allocation5 + $0xf8] sm:$0xff]
        %v339 = vld [vmem:[#allocation5 + $0x100] sm:$0xff]
        %v340 = vld [vmem:[#allocation5 + $0x108] sm:$0xff]
        %v341 = vld [vmem:[#allocation5 + $0x110] sm:$0xff]
        %v342 = vld [vmem:[#allocation5 + $0x118] sm:$0xff]
        %v343 = vld [vmem:[#allocation5 + $0x120] sm:$0xff]
        %v344 = vld [vmem:[#allocation5 + $0x128] sm:$0xff]
        %v345 = vld [vmem:[#allocation5 + $0x130] sm:$0xff]
        %v346 = vld [vmem:[#allocation5 + $0x138] sm:$0xff]
        %v347 = vld [vmem:[#allocation5 + $0x140] sm:$0xff]
        %v348 = vld [vmem:[#allocation5 + $0x148] sm:$0xff]
        %v349 = vld [vmem:[#allocation5 + $0x150] sm:$0xff]
        %v350 = vld [vmem:[#allocation5 + $0x158] sm:$0xff]
        %v351 = vld [vmem:[#allocation5 + $0x160] sm:$0xff]
        %v352 = vld [vmem:[#allocation5 + $0x168] sm:$0xff]
        %v353 = vld [vmem:[#allocation5 + $0x170] sm:$0xff]
        %v354 = vld [vmem:[#allocation5 + $0x178] sm:$0xff]
        %355 = vmatprep.subr.mxu0 0.0
        %356 = vmatpush1.msra.mxu0 %v307
        %357 = vmatprep.subr.mxu0 0.0
        %358 = vmatpush1.msra.mxu0 %v308
        %359 = vmatprep.subr.mxu0 0.0
        %360 = vmatpush1.msra.mxu0 %v309
        %361 = vmatprep.subr.mxu0 0.0
        %362 = vmatpush1.msra.mxu0 %v310
        %363 = vmatprep.subr.mxu0 0.0
        %364 = vmatpush1.msra.mxu0 %v311
        %365 = vmatprep.subr.mxu0 0.0
        %366 = vmatpush1.msra.mxu0 %v312
        %367 = vmatprep.subr.mxu0 0.0
        %368 = vmatpush1.msra.mxu0 %v313
        %369 = vmatprep.subr.mxu0 0.0
        %370 = vmatpush1.msra.mxu0 %v314
        %371 = vmatprep.subr.mxu0 0.0
        %372 = vmatpush1.msra.mxu0 %v315
        %373 = vmatprep.subr.mxu0 0.0
        %374 = vmatpush1.msra.mxu0 %v316
        %375 = vmatprep.subr.mxu0 0.0
        %376 = vmatpush1.msra.mxu0 %v317
        %377 = vmatprep.subr.mxu0 0.0
        %378 = vmatpush1.msra.mxu0 %v318
        %379 = vmatprep.subr.mxu0 0.0
        %380 = vmatpush1.msra.mxu0 %v319
        %381 = vmatprep.subr.mxu0 0.0
        %382 = vmatpush1.msra.mxu0 %v320
        %383 = vmatprep.subr.mxu0 0.0
        %384 = vmatpush1.msra.mxu0 %v321
        %385 = vmatprep.subr.mxu0 0.0
        %386 = vmatpush1.msra.mxu0 %v322
        %387 = vmatprep.subr.mxu0 0.0
        %388 = vmatpush1.msra.mxu0 %v323
        %389 = vmatprep.subr.mxu0 0.0
        %390 = vmatpush1.msra.mxu0 %v324
        %391 = vmatprep.subr.mxu0 0.0
        %392 = vmatpush1.msra.mxu0 %v325
        %393 = vmatprep.subr.mxu0 0.0
        %394 = vmatpush1.msra.mxu0 %v326
        %395 = vmatprep.subr.mxu0 0.0
        %396 = vmatpush1.msra.mxu0 %v327
        %397 = vmatprep.subr.mxu0 0.0
        %398 = vmatpush1.msra.mxu0 %v328
        %399 = vmatprep.subr.mxu0 0.0
        %400 = vmatpush1.msra.mxu0 %v329
        %401 = vmatprep.subr.mxu0 0.0
        %402 = vmatpush1.msra.mxu0 %v330
        %403 = vmatprep.subr.mxu0 0.0
        %404 = vmatpush1.msra.mxu0 %v331
        %405 = vmatprep.subr.mxu0 0.0
        %406 = vmatpush1.msra.mxu0 %v332
        %407 = vmatprep.subr.mxu0 0.0
        %408 = vmatpush1.msra.mxu0 %v333
        %409 = vmatprep.subr.mxu0 0.0
        %410 = vmatpush1.msra.mxu0 %v334
        %411 = vmatprep.subr.mxu0 0.0
        %412 = vmatpush1.msra.mxu0 %v335
        %413 = vmatprep.subr.mxu0 0.0
        %414 = vmatpush1.msra.mxu0 %v336
        %415 = vmatprep.subr.mxu0 0.0
        %416 = vmatpush1.msra.mxu0 %v337
        %417 = vmatprep.subr.mxu0 0.0
        %418 = vmatpush1.msra.mxu0 %v338
        %419 = vmatprep.mubr.f32.mxu0 %v289
        %420 = vmatmul.mubr.f32.gmra.mrb[0].mxu0 %v299
        %v421 = vpop.f32.mrb[0].mxu0
        %v422 = vadd.f32 0.0, %v421
        %v423 = vpop.f32.mrb[0].mxu0
        %424 = vmatprep.mubr.f32.mxu0 %v290
        %425 = vmatmul.mubr.f32.gmra.mrb[0].mxu0 %v296
        %v426 = vpop.f32.mrb[0].mxu0
        %v427 = vadd.f32 0.0, %v426
        %v428 = vpop.f32.mrb[0].mxu0
        %429 = vdwg.mxu0
        %430 = vmatprep.subr.mxu0 0.0
        %431 = vmatpush1.msra.mxu0 %v339
        %432 = vmatprep.subr.mxu0 0.0
        %433 = vmatpush1.msra.mxu0 %v340
        %434 = vmatprep.subr.mxu0 0.0
        %435 = vmatpush1.msra.mxu0 %v341
        %436 = vmatprep.subr.mxu0 0.0
        %437 = vmatpush1.msra.mxu0 %v342
        %438 = vmatprep.subr.mxu0 0.0
        %439 = vmatpush1.msra.mxu0 %v343
        %440 = vmatprep.subr.mxu0 0.0
        %441 = vmatpush1.msra.mxu0 %v344
        %442 = vmatprep.subr.mxu0 0.0
        %443 = vmatpush1.msra.mxu0 %v345
        %444 = vmatprep.subr.mxu0 0.0
        %445 = vmatpush1.msra.mxu0 %v346
        %446 = vmatprep.subr.mxu0 0.0
        %447 = vmatpush1.msra.mxu0 %v347
        %448 = vmatprep.subr.mxu0 0.0
        %449 = vmatpush1.msra.mxu0 %v348
        %450 = vmatprep.subr.mxu0 0.0
        %451 = vmatpush1.msra.mxu0 %v349
        %452 = vmatprep.subr.mxu0 0.0
        %453 = vmatpush1.msra.mxu0 %v350
        %454 = vmatprep.subr.mxu0 0.0
        %455 = vmatpush1.msra.mxu0 %v351
        %456 = vmatprep.subr.mxu0 0.0
        %457 = vmatpush1.msra.mxu0 %v352
        %458 = vmatprep.subr.mxu0 0.0
        %459 = vmatpush1.msra.mxu0 %v353
        %460 = vmatprep.subr.mxu0 0.0
        %461 = vmatpush1.msra.mxu0 %v354
        %462 = vmatprep.subr.mxu0 0.0
        %463 = vmatpush1.msra.mxu0 0.0
        %464 = vmatprep.subr.mxu0 0.0
        %465 = vmatpush1.msra.mxu0 0.0
        %466 = vmatprep.subr.mxu0 0.0
        %467 = vmatpush1.msra.mxu0 0.0
        %468 = vmatprep.subr.mxu0 0.0
        %469 = vmatpush1.msra.mxu0 0.0
        %470 = vmatprep.subr.mxu0 0.0
        %471 = vmatpush1.msra.mxu0 0.0
        %472 = vmatprep.subr.mxu0 0.0
        %473 = vmatpush1.msra.mxu0 0.0
        %474 = vmatprep.subr.mxu0 0.0
        %475 = vmatpush1.msra.mxu0 0.0
        %476 = vmatprep.subr.mxu0 0.0
        %477 = vmatpush1.msra.mxu0 0.0
        %478 = vmatprep.subr.mxu0 0.0
        %479 = vmatpush1.msra.mxu0 0.0
        %480 = vmatprep.subr.mxu0 0.0
        %481 = vmatpush1.msra.mxu0 0.0
        %482 = vmatprep.subr.mxu0 0.0
        %483 = vmatpush1.msra.mxu0 0.0
        %484 = vmatprep.subr.mxu0 0.0
        %485 = vmatpush1.msra.mxu0 0.0
        %486 = vmatprep.subr.mxu0 0.0
        %487 = vmatpush1.msra.mxu0 0.0
        %488 = vmatprep.subr.mxu0 0.0
        %489 = vmatpush1.msra.mxu0 0.0
        %490 = vmatprep.subr.mxu0 0.0
        %491 = vmatpush1.msra.mxu0 0.0
        %492 = vmatprep.subr.mxu0 0.0
        %493 = vmatpush1.msra.mxu0 0.0
        %494 = vmatprep.mubr.f32.mxu0 0.0
        %495 = vmatmul.mubr.f32.gmra.mrb[0].mxu0 %v303
        %v496 = vpop.f32.mrb[0].mxu0
        %v497 = vadd.f32 %v422, %v496
        %v498 = vpop.f32.mrb[0].mxu0
        %499 = vmatprep.mubr.f32.mxu0 0.0
        %500 = vmatmul.mubr.f32.gmra.mrb[0].mxu0 %v306
        %v501 = vpop.f32.mrb[0].mxu0
        %v502 = vadd.f32 %v427, %v501
        %v503 = vpop.f32.mrb[0].mxu0
        %504 = vdwg.mxu0
        %505 = vst [vmem:[%s261] sm:$0xff] %v497
        %506 = vst [vmem:[%s261 + $0x8] sm:$0xff] %v502
        %v507 = vadd.f32 %v497, %v502
        %v508 = vrot.slane %v507, 4
        %v509 = vadd.f32 %v507, %v508
        %v510 = vrot.slane %v509, 2
        %v511 = vadd.f32 %v509, %v510
        %v512 = vrot.slane %v511, 1
        %v513 = vadd.f32 %v511, %v512
        %v514 = vmul.f32 %v497, %v497
        %v515 = vmul.f32 %v502, %v502
        %v516 = vadd.f32 %v514, %v515
        %v517 = vrot.slane %v516, 4
        %v518 = vadd.f32 %v516, %v517
        %v519 = vrot.slane %v518, 2
        %v520 = vadd.f32 %v518, %v519
        %v521 = vrot.slane %v520, 1
        %v522 = vadd.f32 %v520, %v521
        %v523 = vsel %vm293, %v513, %v522
        %524 = vst [vmem:[%s268] sm:$0x3] %v523
        %s525 = sand.u32 %s124, 1
        %s526 = scalar_lea.sflag [#allocation4], %s525
        %s527 = sand.u32 %s124, 1
        %s528 = smul.addr %s527, 16
        %s529 = scalar_lea.vmem [#allocation7], %s528
        %s530 = sand.u32 %s150, 1
        %s531 = scalar_lea.sflag [#allocation9], %s530
        %s532 = sand.u32 %s150, 1
        %s533 = smul.addr %s532, 2
        %s534 = scalar_lea.vmem [#allocation8], %s533
        // Predicated region
        $region45: #{tpu_custom_call.1} parent=35 // pred_check
          %p535 = pneg %p134
        $region46: #{tpu_custom_call.1} parent=35 // pred_check_branch
          %537 = sbr.rel (%p535) target = $region48
        $region47: #{tpu_custom_call.1} parent=35 // pred_region
          %s539 = ssub.s32 256, 256
          %540 = vsyncadd %s526, %s539
          %s541 = smul.addr %s27, 2
          %s542 = smul.addr %s541, 128
          %s543 = scalar_lea.hbm %s4, %s542
          %s544 = sshll.u32 %s529, 4
          %s545 = int_to_ptr.vmem [resolvable:$true] %s544
          %550 = dma.vmem_to_hbm [thread:$0]  %s545, 256, %s543, %s526, 128, 128, 8
        $region48: #{tpu_custom_call.1} parent=35 // pred_fallthru
          _
        // Predicated region
        $region49: #{tpu_custom_call.1} parent=35 // pred_check
          %p551 = pneg %p160
        $region50: #{tpu_custom_call.1} parent=35 // pred_check_branch
          %553 = sbr.rel (%p551) target = $region52
        $region51: #{tpu_custom_call.1} parent=35 // pred_region
          %s555 = ssub.s32 32, 32
          %556 = vsyncadd %s531, %s555
          %s557 = smul.addr %s27, 32
          %s558 = scalar_lea.hbm %s5, %s557
          %s560 = sshll.u32 %s534, 4
          %s561 = int_to_ptr.vmem [resolvable:$true] %s560
          %563 = dma.vmem_to_hbm [thread:$0]  %s561, 32, %s558, %s531
        $region52: #{tpu_custom_call.1} parent=35 // pred_fallthru
          _
      $region36: #{tpu_custom_call.1} parent=5 // pred_fallthru
        _
      %p564 = scmp.le.s32.totalorder 2, %s22
      // Predicated region
      $region53: #{tpu_custom_call.1} parent=5 // pred_check
        %p565 = pneg %p564
      $region54: #{tpu_custom_call.1} parent=5 // pred_check_branch
        %567 = sbr.rel (%p565) target = $region56
      $region55: #{tpu_custom_call.1} parent=5 // pred_region
        %s568 = ssub.s32 %s22, 2
        // Predicated region
        $region57: #{tpu_custom_call.1} parent=55 // pred_check
          %p569 = pneg %p140
        $region58: #{tpu_custom_call.1} parent=55 // pred_check_branch
          %571 = sbr.rel (%p569) target = $region60
        $region59: #{tpu_custom_call.1} parent=55 // pred_region
          %s572 = sand.u32 %s125, 1
          %s573 = scalar_lea.sflag [#allocation4], %s572
          %s574 = sand.u32 %s125, 1
          %s575 = smul.addr %s574, 16
          %s576 = scalar_lea.vmem [#allocation7], %s575
          %577 = dma.done %s573, 256
        $region60: #{tpu_custom_call.1} parent=55 // pred_fallthru
          _
        // Predicated region
        $region61: #{tpu_custom_call.1} parent=55 // pred_check
          %p578 = pneg %p166
        $region62: #{tpu_custom_call.1} parent=55 // pred_check_branch
          %580 = sbr.rel (%p578) target = $region64
        $region63: #{tpu_custom_call.1} parent=55 // pred_region
          %s581 = sand.u32 %s151, 1
          %s582 = scalar_lea.sflag [#allocation9], %s581
          %s583 = sand.u32 %s151, 1
          %s584 = smul.addr %s583, 2
          %s585 = scalar_lea.vmem [#allocation8], %s584
          %586 = dma.done %s582, 32
        $region64: #{tpu_custom_call.1} parent=55 // pred_fallthru
          _
      $region56: #{tpu_custom_call.1} parent=5 // pred_fallthru
        _
    $region6: #{tpu_custom_call.1} parent=1 // loop_footer
      %s26 = sadd.s32 1, %s22
    $region7: #{tpu_custom_call.1} parent=1 // loop_footer_branch
      %21 = sbr.rel target = $region3
    $region8: #{tpu_custom_call.1} parent=1 // loop_exit
      _
    %587 = vsyncpa [#allocation3], 1
    %s588 = scalar_lea.sflag [#allocation3], 1
    %589 = vsyncpa %s588, 1
    %590 = vsyncpa [#allocation6], 1
    %591 = vsyncpa [#allocation4], 1
    %s592 = scalar_lea.sflag [#allocation4], 1
    %593 = vsyncpa %s592, 1
    %594 = vsyncpa [#allocation9], 1
    %s595 = scalar_lea.sflag [#allocation9], 1
    %596 = vsyncpa %s595, 1

</llo_original>
